<compile_context>
chip_gen: v5e
topology: v5e:2x2
jax: 0.10.0
libtpu: 0.0.40
codegen_flags: <defaults>
</compile_context>

<pallas_src>
import functools

import jax
import jax.numpy as jnp
from jax.experimental import pallas as pl
from jax.experimental.pallas import tpu as pltpu


def lstm_encoder_kernel(emb_ref, w0_ref, b0_ref, wcomb_ref, b1_ref,
                        out_ref, hid_ref, cell_ref, rec_sc):
    """One time-chunk of the staggered, fused 2-layer LSTM recurrence."""
    Tc, B, E = emb_ref.shape
    H = hid_ref.shape[-1]
    G = 4 * H
    s = pl.program_id(0)

    # hidden/cell output blocks are resident across the (sequential) time grid and
    # double as the h/c carries; rec_sc carries h0(t-1) @ Whh0 across steps/chunks.
    @pl.when(s == 0)
    def _():
        hid_ref[...] = jnp.zeros_like(hid_ref)
        cell_ref[...] = jnp.zeros_like(cell_ref)
        rec_sc[...] = jnp.zeros_like(rec_sc)

    # Hoisted, non-recurrent layer-0 input projection for THIS chunk only:
    # one (Tc*B, E) x (E, 4H) bf16 MXU matmul, f32 accumulate, bias folded in once.
    xw0 = jnp.dot(emb_ref[...].reshape(Tc * B, E), w0_ref[...],
                  preferred_element_type=jnp.float32)
    xw0 = (xw0 + b0_ref[...]).reshape(Tc, B, G)

    wcomb = wcomb_ref[...]                                  # (2H, 8H) bf16
    b1 = jnp.broadcast_to(b1_ref[...], (B, G))              # hoisted broadcast

    h0 = hid_ref[0]
    h1 = hid_ref[1]
    c0 = cell_ref[0]
    c1 = cell_ref[1]
    rec0 = rec_sc[...]                                      # h0(t-1) @ Whh0

    def gates_to_hc(g, c_prev):
        # Gate columns are pre-permuted to [i, f, o, g]: one wide tanh covers the
        # three sigmoids, one tanh covers g.  All elementwise math in f32.
        sig = 0.5 * (jnp.tanh(0.5 * g[:, :3 * H]) + 1.0)
        i, f, o = sig[:, :H], sig[:, H:2 * H], sig[:, 2 * H:]
        gg = jnp.tanh(g[:, 3 * H:])
        c_new = f * c_prev + i * gg
        return o * jnp.tanh(c_new), c_new

    # Static unroll inside the chunk; vreg live ranges are bounded by chunk size.
    # TODO(synk): switch the inner loop to lax.fori_loop(..., unroll=2..4) if Tc is
    # made large at realistic sequence lengths.
    for t in range(Tc):
        # -- layer 0, step t: hoisted x-projection + recurrent term from t-1 -----
        h0, c0 = gates_to_hc(xw0[t] + rec0, c0)
        # -- single fused recurrent matmul for BOTH layers ------------------------
        #    [h0(t), h1(t-1)] @ [[Whh0, Wih1], [0, Whh1]]
        comb = jnp.dot(
            jnp.concatenate([h0, h1], axis=-1).astype(wcomb.dtype),
            wcomb, preferred_element_type=jnp.float32)
        rec0 = comb[:, :G]                                  # layer-0 term for t+1
        # -- layer 1, step t ------------------------------------------------------
        h1, c1 = gates_to_hc(comb[:, G:] + b1, c1)
        out_ref[t] = h1.astype(out_ref.dtype)               # contiguous (B,H) store

    # Persist carries for the next chunk (== final states after the last chunk).
    hid_ref[0] = h0
    hid_ref[1] = h1
    cell_ref[0] = c0
    cell_ref[1] = c1
    rec_sc[...] = rec0


def _reorder_gates(w):
    """Permute last-dim gate blocks from PyTorch (i, f, g, o) to (i, f, o, g)."""
    i, f, g, o = jnp.split(w, 4, axis=-1)
    return jnp.concatenate([i, f, o, g], axis=-1)


@functools.partial(jax.jit, static_argnames=("time_chunk",))
def encoder_forward(src, params, *, time_chunk=4):
    B, S = src.shape
    E = params["embedding"].shape[1]
    H = params["whh0"].shape[0]
    G = 4 * H
    Tc = time_chunk if S % time_chunk == 0 else S

    # Embedding gather kept as plain-JAX glue; table cast to bf16 to halve the HBM
    # feed into the kernel.
    # TODO(synk): for large vocab / long sequences, fuse the gather into the kernel
    # via PrefetchScalarGridSpec scalar-prefetched token ids + per-row DMA.
    emb_tm = jnp.transpose(params["embedding"].astype(jnp.bfloat16)[src],
                           (1, 0, 2))                       # (S, B, E) time-major

    # One-time gate-column permutation + weight fusion (bf16 MXU operands).
    w0 = _reorder_gates(params["wih0"]).astype(jnp.bfloat16)          # (E, 4H)
    b0 = _reorder_gates(params["b0"])                                  # (1, 4H) f32
    whh0 = _reorder_gates(params["whh0"])
    wih1 = _reorder_gates(params["wih1"])
    whh1 = _reorder_gates(params["whh1"])
    b1 = _reorder_gates(params["b1"])                                  # (1, 4H) f32
    wcomb = jnp.concatenate(
        [jnp.concatenate([whh0, wih1], axis=1),
         jnp.concatenate([jnp.zeros_like(whh1), whh1], axis=1)],
        axis=0).astype(jnp.bfloat16)                                   # (2H, 8H)

    out_tm, hidden, cell = pl.pallas_call(
        lstm_encoder_kernel,
        out_shape=(
            jax.ShapeDtypeStruct((S, B, H), jnp.float32),
            jax.ShapeDtypeStruct((2, B, H), jnp.float32),
            jax.ShapeDtypeStruct((2, B, H), jnp.float32),
        ),
        grid_spec=pltpu.PrefetchScalarGridSpec(
            num_scalar_prefetch=0,
            grid=(S // Tc,),
            in_specs=[
                pl.BlockSpec((Tc, B, E), lambda s: (s, 0, 0)),      # emb chunk
                pl.BlockSpec((E, G), lambda s: (0, 0)),             # Wih0 (bf16)
                pl.BlockSpec((1, G), lambda s: (0, 0)),             # b0
                pl.BlockSpec((2 * H, 8 * H), lambda s: (0, 0)),     # fused W_comb
                pl.BlockSpec((1, G), lambda s: (0, 0)),             # b1
            ],
            out_specs=(
                pl.BlockSpec((Tc, B, H), lambda s: (s, 0, 0)),      # outputs chunk
                pl.BlockSpec((2, B, H), lambda s: (0, 0, 0)),       # hidden (resident)
                pl.BlockSpec((2, B, H), lambda s: (0, 0, 0)),       # cell (resident)
            ),
            scratch_shapes=[pltpu.VMEM((B, G), jnp.float32)],       # h0 @ Whh0 carry
        ),
        compiler_params=pltpu.CompilerParams(
            dimension_semantics=("arbitrary",),          # time is sequential
            vmem_limit_bytes=48 * 1024 * 1024,           # sized for v7x's 64 MiB/TC
        ),
    )(emb_tm, w0, b0, wcomb, b1)

    # TODO(synk): on v7x add a leading 'parallel' batch grid axis (B-chunks) so both
    # TensorCores run independent slices of the recurrence, and pad B/H to (8,128)
    # multiples at real sizes so gate slices / stores are unmasked.
    outputs = jnp.transpose(out_tm, (1, 0, 2))            # back to batch_first
    return outputs, hidden, cell


# ---------------- pure-JAX reference (for correctness check) ----------------
def _lstm_layer_ref(x_sbe, wih, whh, b, H):
    B = x_sbe.shape[1]

    def step(carry, xt):
        h, c = carry
        gates = xt @ wih + h @ whh + b
        i = jax.nn.sigmoid(gates[:, :H])
        f = jax.nn.sigmoid(gates[:, H:2 * H])
        g = jnp.tanh(gates[:, 2 * H:3 * H])
        o = jax.nn.sigmoid(gates[:, 3 * H:])
        c = f * c + i * g
        h = o * jnp.tanh(c)
        return (h, c), h

    init = (jnp.zeros((B, H), jnp.float32), jnp.zeros((B, H), jnp.float32))
    (h, c), ys = jax.lax.scan(step, init, x_sbe)
    return ys, h, c


def encoder_ref(src, params):
    emb = params["embedding"][src]
    x = jnp.transpose(emb, (1, 0, 2))
    H = params["whh0"].shape[0]
    y0, h0, c0 = _lstm_layer_ref(x, params["wih0"], params["whh0"],
                                 params["b0"], H)
    y1, h1, c1 = _lstm_layer_ref(y0, params["wih1"], params["whh1"],
                                 params["b1"], H)
    return (jnp.transpose(y1, (1, 0, 2)),
            jnp.stack([h0, h1]), jnp.stack([c0, c1]))


if __name__ == "__main__":
    # Small deterministic config consistent with the module's __init__.
    input_dim = 20   # vocab size
    emb_dim = 16
    hid_dim = 32
    B, S = 2, 8

    key = jax.random.PRNGKey(0)
    ks = jax.random.split(key, 8)
    scale = 1.0 / jnp.sqrt(hid_dim)

    params = {
        "embedding": jax.random.normal(ks[0], (input_dim, emb_dim),
                                       jnp.float32) * 0.1,
        # layer 0: weights stored transposed (in_dim, 4H) for x @ W, gate order i,f,g,o
        "wih0": jax.random.uniform(ks[1], (emb_dim, 4 * hid_dim), jnp.float32,
                                   -scale, scale),
        "whh0": jax.random.uniform(ks[2], (hid_dim, 4 * hid_dim), jnp.float32,
                                   -scale, scale),
        "b0": jax.random.uniform(ks[3], (1, 4 * hid_dim), jnp.float32,
                                 -scale, scale),
        # layer 1
        "wih1": jax.random.uniform(ks[4], (hid_dim, 4 * hid_dim), jnp.float32,
                                   -scale, scale),
        "whh1": jax.random.uniform(ks[5], (hid_dim, 4 * hid_dim), jnp.float32,
                                   -scale, scale),
        "b1": jax.random.uniform(ks[6], (1, 4 * hid_dim), jnp.float32,
                                 -scale, scale),
    }

    src = jax.random.randint(ks[7], (B, S), 0, input_dim, jnp.int32)

    outputs, hidden, cell = jax.block_until_ready(encoder_forward(src, params))
    r_out, r_hid, r_cell = jax.block_until_ready(encoder_ref(src, params))

    assert outputs.shape == (B, S, hid_dim)
    assert hidden.shape == (2, B, hid_dim)
    assert cell.shape == (2, B, hid_dim)
    # Tolerance relaxed vs. the f32 version: MXU operands are bf16 (f32 accumulate).
    assert jnp.allclose(outputs, r_out, atol=2e-2)
    assert jnp.allclose(hidden, r_hid, atol=2e-2)
    assert jnp.allclose(cell, r_cell, atol=2e-2)

    print("KERNEL_OK")
</pallas_src>

<mosaic_0001>
module attributes {stable_mosaic.version = 11 : i64} {
  func.func @lstm_encoder_kernel(%arg0: i32, %arg1: memref<4x2x16xbf16, #tpu.memory_space<vmem>>, %arg2: memref<16x128xbf16, #tpu.memory_space<vmem>>, %arg3: memref<1x128xf32, #tpu.memory_space<vmem>>, %arg4: memref<64x256xbf16, #tpu.memory_space<vmem>>, %arg5: memref<1x128xf32, #tpu.memory_space<vmem>>, %arg6: memref<4x2x32xf32, #tpu.memory_space<vmem>>, %arg7: memref<2x2x32xf32, #tpu.memory_space<vmem>>, %arg8: memref<2x2x32xf32, #tpu.memory_space<vmem>>, %arg9: memref<2x128xf32, #tpu.memory_space<vmem>>) attributes {dimension_semantics = [#tpu.dimension_semantics<arbitrary>], iteration_bounds = array<i64: 2>, scalar_prefetch = 0 : i64, scratch_operands = 1 : i64, tpu.core_type = #tpu.core_type<tc>, window_params = [{transform_indices = @transform_0, window_bounds = array<i64: 4, 2, 16>}, {pipeline_mode = #tpu.pipeline_mode<synchronous>, transform_indices = @transform_1, window_bounds = array<i64: 16, 128>}, {pipeline_mode = #tpu.pipeline_mode<synchronous>, transform_indices = @transform_2, window_bounds = array<i64: 1, 128>}, {pipeline_mode = #tpu.pipeline_mode<synchronous>, transform_indices = @transform_3, window_bounds = array<i64: 64, 256>}, {pipeline_mode = #tpu.pipeline_mode<synchronous>, transform_indices = @transform_4, window_bounds = array<i64: 1, 128>}, {transform_indices = @transform_5, window_bounds = array<i64: 4, 2, 32>}, {pipeline_mode = #tpu.pipeline_mode<synchronous>, transform_indices = @transform_6, window_bounds = array<i64: 2, 2, 32>}, {pipeline_mode = #tpu.pipeline_mode<synchronous>, transform_indices = @transform_7, window_bounds = array<i64: 2, 2, 32>}]} {
    %c0_i32 = arith.constant 0 : i32
    %0 = arith.cmpi eq, %arg0, %c0_i32 : i32
    %1 = arith.extui %0 : i1 to i32
    %c0_i32_0 = arith.constant 0 : i32
    %2 = arith.cmpi ne, %1, %c0_i32_0 : i32
    scf.if %2 {
      %cst_73 = arith.constant 0.000000e+00 : f32
      %227 = vector.broadcast %cst_73 : f32 to vector<2x2x32xf32>
      %c0_74 = arith.constant 0 : index
      %c0_75 = arith.constant 0 : index
      %c0_76 = arith.constant 0 : index
      %228 = vector.load %arg7[%c0_74, %c0_75, %c0_76] : memref<2x2x32xf32, #tpu.memory_space<vmem>>, vector<2x2x32xf32>
      tpu.vector_store %arg7[%c0_74, %c0_75, %c0_76], %227 {strides = array<i32>} : memref<2x2x32xf32, #tpu.memory_space<vmem>>, vector<2x2x32xf32>,
      %cst_77 = arith.constant 0.000000e+00 : f32
      %229 = vector.broadcast %cst_77 : f32 to vector<2x2x32xf32>
      %c0_78 = arith.constant 0 : index
      %c0_79 = arith.constant 0 : index
      %c0_80 = arith.constant 0 : index
      %230 = vector.load %arg8[%c0_78, %c0_79, %c0_80] : memref<2x2x32xf32, #tpu.memory_space<vmem>>, vector<2x2x32xf32>
      tpu.vector_store %arg8[%c0_78, %c0_79, %c0_80], %229 {strides = array<i32>} : memref<2x2x32xf32, #tpu.memory_space<vmem>>, vector<2x2x32xf32>,
      %cst_81 = arith.constant 0.000000e+00 : f32
      %231 = vector.broadcast %cst_81 : f32 to vector<2x128xf32>
      %c0_82 = arith.constant 0 : index
      %c0_83 = arith.constant 0 : index
      %232 = vector.load %arg9[%c0_82, %c0_83] : memref<2x128xf32, #tpu.memory_space<vmem>>, vector<2x128xf32>
      tpu.vector_store %arg9[%c0_82, %c0_83], %231 {strides = array<i32>} : memref<2x128xf32, #tpu.memory_space<vmem>>, vector<2x128xf32>,
    } else {
    }
    %c0 = arith.constant 0 : index
    %c0_1 = arith.constant 0 : index
    %c0_2 = arith.constant 0 : index
    %3 = vector.load %arg1[%c0, %c0_1, %c0_2] : memref<4x2x16xbf16, #tpu.memory_space<vmem>>, vector<4x2x16xbf16>
    %4 = vector.shape_cast %3 : vector<4x2x16xbf16> to vector<8x16xbf16>
    %c0_3 = arith.constant 0 : index
    %c0_4 = arith.constant 0 : index
    %5 = vector.load %arg2[%c0_3, %c0_4] : memref<16x128xbf16, #tpu.memory_space<vmem>>, vector<16x128xbf16>
    %cst = arith.constant dense<0.000000e+00> : vector<8x128xf32>
    %6 = tpu.matmul %4, %5, %cst {dimension_numbers = #tpu.dot_dimension_numbers<[1], [0], [0], [1], [0, 0, 1, 1], [], []>} : vector<8x16xbf16>, vector<16x128xbf16>, vector<8x128xf32> -> vector<8x128xf32>
    %c0_5 = arith.constant 0 : index
    %c0_6 = arith.constant 0 : index
    %7 = vector.load %arg3[%c0_5, %c0_6] : memref<1x128xf32, #tpu.memory_space<vmem>>, vector<1x128xf32>
    %8 = vector.broadcast %7 : vector<1x128xf32> to vector<8x128xf32>
    %9 = arith.addf %6, %8 : vector<8x128xf32>
    %10 = vector.shape_cast %9 : vector<8x128xf32> to vector<4x2x128xf32>
    %c0_7 = arith.constant 0 : index
    %c0_8 = arith.constant 0 : index
    %11 = vector.load %arg4[%c0_7, %c0_8] : memref<64x256xbf16, #tpu.memory_space<vmem>>, vector<64x256xbf16>
    %c0_9 = arith.constant 0 : index
    %c0_10 = arith.constant 0 : index
    %12 = vector.load %arg5[%c0_9, %c0_10] : memref<1x128xf32, #tpu.memory_space<vmem>>, vector<1x128xf32>
    %13 = vector.shape_cast %12 : vector<1x128xf32> to vector<1x128xf32>
    %14 = vector.broadcast %13 : vector<1x128xf32> to vector<2x128xf32>
    %c1 = arith.constant 1 : index
    %c0_11 = arith.constant 0 : index
    %c0_12 = arith.constant 0 : index
    %15 = vector.load %arg7[%c1, %c0_11, %c0_12] : memref<2x2x32xf32, #tpu.memory_space<vmem>>, vector<1x2x32xf32>
    %16 = vector.shape_cast %15 : vector<1x2x32xf32> to vector<2x32xf32>
    %c0_13 = arith.constant 0 : index
    %c0_14 = arith.constant 0 : index
    %c0_15 = arith.constant 0 : index
    %17 = vector.load %arg8[%c0_13, %c0_14, %c0_15] : memref<2x2x32xf32, #tpu.memory_space<vmem>>, vector<1x2x32xf32>
    %18 = vector.shape_cast %17 : vector<1x2x32xf32> to vector<2x32xf32>
    %c1_16 = arith.constant 1 : index
    %c0_17 = arith.constant 0 : index
    %c0_18 = arith.constant 0 : index
    %19 = vector.load %arg8[%c1_16, %c0_17, %c0_18] : memref<2x2x32xf32, #tpu.memory_space<vmem>>, vector<1x2x32xf32>
    %20 = vector.shape_cast %19 : vector<1x2x32xf32> to vector<2x32xf32>
    %c0_19 = arith.constant 0 : index
    %c0_20 = arith.constant 0 : index
    %21 = vector.load %arg9[%c0_19, %c0_20] : memref<2x128xf32, #tpu.memory_space<vmem>>, vector<2x128xf32>
    %22 = vector.extract_strided_slice %10 {offsets = [0, 0, 0], sizes = [1, 2, 128], strides = [1, 1, 1]} : vector<4x2x128xf32> to vector<1x2x128xf32>
    %23 = vector.shape_cast %22 : vector<1x2x128xf32> to vector<2x128xf32>
    %24 = arith.addf %23, %21 : vector<2x128xf32>
    %25 = vector.extract_strided_slice %24 {offsets = [0, 0], sizes = [2, 96], strides = [1, 1]} : vector<2x128xf32> to vector<2x96xf32>
    %cst_21 = arith.constant 5.000000e-01 : f32
    %26 = vector.broadcast %cst_21 : f32 to vector<2x96xf32>
    %27 = arith.mulf %26, %25 : vector<2x96xf32>
    %28 = math.tanh %27 : vector<2x96xf32>
    %cst_22 = arith.constant 1.000000e+00 : f32
    %29 = vector.broadcast %cst_22 : f32 to vector<2x96xf32>
    %30 = arith.addf %28, %29 : vector<2x96xf32>
    %cst_23 = arith.constant 5.000000e-01 : f32
    %31 = vector.broadcast %cst_23 : f32 to vector<2x96xf32>
    %32 = arith.mulf %31, %30 : vector<2x96xf32>
    %33 = vector.extract_strided_slice %32 {offsets = [0, 0], sizes = [2, 32], strides = [1, 1]} : vector<2x96xf32> to vector<2x32xf32>
    %34 = vector.extract_strided_slice %32 {offsets = [0, 32], sizes = [2, 32], strides = [1, 1]} : vector<2x96xf32> to vector<2x32xf32>
    %35 = vector.extract_strided_slice %32 {offsets = [0, 64], sizes = [2, 32], strides = [1, 1]} : vector<2x96xf32> to vector<2x32xf32>
    %36 = vector.extract_strided_slice %24 {offsets = [0, 96], sizes = [2, 32], strides = [1, 1]} : vector<2x128xf32> to vector<2x32xf32>
    %37 = math.tanh %36 : vector<2x32xf32>
    %38 = arith.mulf %34, %18 : vector<2x32xf32>
    %39 = arith.mulf %33, %37 : vector<2x32xf32>
    %40 = arith.addf %38, %39 : vector<2x32xf32>
    %41 = math.tanh %40 : vector<2x32xf32>
    %42 = arith.mulf %35, %41 : vector<2x32xf32>
    %43 = tpu.concatenate %42, %16 in 1 : vector<2x32xf32>, vector<2x32xf32> -> vector<2x64xf32>
    %44 = arith.truncf %43 : vector<2x64xf32> to vector<2x64xbf16>
    %cst_24 = arith.constant dense<0.000000e+00> : vector<2x256xf32>
    %45 = tpu.matmul %44, %11, %cst_24 {dimension_numbers = #tpu.dot_dimension_numbers<[1], [0], [0], [1], [0, 0, 1, 1], [], []>} : vector<2x64xbf16>, vector<64x256xbf16>, vector<2x256xf32> -> vector<2x256xf32>
    %46 = vector.extract_strided_slice %45 {offsets = [0, 0], sizes = [2, 128], strides = [1, 1]} : vector<2x256xf32> to vector<2x128xf32>
    %47 = vector.extract_strided_slice %45 {offsets = [0, 128], sizes = [2, 128], strides = [1, 1]} : vector<2x256xf32> to vector<2x128xf32>
    %48 = arith.addf %47, %14 : vector<2x128xf32>
    %49 = vector.extract_strided_slice %48 {offsets = [0, 0], sizes = [2, 96], strides = [1, 1]} : vector<2x128xf32> to vector<2x96xf32>
    %cst_25 = arith.constant 5.000000e-01 : f32
    %50 = vector.broadcast %cst_25 : f32 to vector<2x96xf32>
    %51 = arith.mulf %50, %49 : vector<2x96xf32>
    %52 = math.tanh %51 : vector<2x96xf32>
    %cst_26 = arith.constant 1.000000e+00 : f32
    %53 = vector.broadcast %cst_26 : f32 to vector<2x96xf32>
    %54 = arith.addf %52, %53 : vector<2x96xf32>
    %cst_27 = arith.constant 5.000000e-01 : f32
    %55 = vector.broadcast %cst_27 : f32 to vector<2x96xf32>
    %56 = arith.mulf %55, %54 : vector<2x96xf32>
    %57 = vector.extract_strided_slice %56 {offsets = [0, 0], sizes = [2, 32], strides = [1, 1]} : vector<2x96xf32> to vector<2x32xf32>
    %58 = vector.extract_strided_slice %56 {offsets = [0, 32], sizes = [2, 32], strides = [1, 1]} : vector<2x96xf32> to vector<2x32xf32>
    %59 = vector.extract_strided_slice %56 {offsets = [0, 64], sizes = [2, 32], strides = [1, 1]} : vector<2x96xf32> to vector<2x32xf32>
    %60 = vector.extract_strided_slice %48 {offsets = [0, 96], sizes = [2, 32], strides = [1, 1]} : vector<2x128xf32> to vector<2x32xf32>
    %61 = math.tanh %60 : vector<2x32xf32>
    %62 = arith.mulf %58, %20 : vector<2x32xf32>
    %63 = arith.mulf %57, %61 : vector<2x32xf32>
    %64 = arith.addf %62, %63 : vector<2x32xf32>
    %65 = math.tanh %64 : vector<2x32xf32>
    %66 = arith.mulf %59, %65 : vector<2x32xf32>
    %c0_28 = arith.constant 0 : index
    %c0_29 = arith.constant 0 : index
    %c0_30 = arith.constant 0 : index
    %67 = vector.load %arg6[%c0_28, %c0_29, %c0_30] : memref<4x2x32xf32, #tpu.memory_space<vmem>>, vector<1x2x32xf32>
    %68 = vector.shape_cast %67 : vector<1x2x32xf32> to vector<2x32xf32>
    %69 = vector.shape_cast %66 : vector<2x32xf32> to vector<1x2x32xf32>
    tpu.vector_store %arg6[%c0_28, %c0_29, %c0_30], %69 {strides = array<i32>} : memref<4x2x32xf32, #tpu.memory_space<vmem>>, vector<1x2x32xf32>,
    %70 = vector.extract_strided_slice %10 {offsets = [1, 0, 0], sizes = [1, 2, 128], strides = [1, 1, 1]} : vector<4x2x128xf32> to vector<1x2x128xf32>
    %71 = vector.shape_cast %70 : vector<1x2x128xf32> to vector<2x128xf32>
    %72 = arith.addf %71, %46 : vector<2x128xf32>
    %73 = vector.extract_strided_slice %72 {offsets = [0, 0], sizes = [2, 96], strides = [1, 1]} : vector<2x128xf32> to vector<2x96xf32>
    %cst_31 = arith.constant 5.000000e-01 : f32
    %74 = vector.broadcast %cst_31 : f32 to vector<2x96xf32>
    %75 = arith.mulf %74, %73 : vector<2x96xf32>
    %76 = math.tanh %75 : vector<2x96xf32>
    %cst_32 = arith.constant 1.000000e+00 : f32
    %77 = vector.broadcast %cst_32 : f32 to vector<2x96xf32>
    %78 = arith.addf %76, %77 : vector<2x96xf32>
    %cst_33 = arith.constant 5.000000e-01 : f32
    %79 = vector.broadcast %cst_33 : f32 to vector<2x96xf32>
    %80 = arith.mulf %79, %78 : vector<2x96xf32>
    %81 = vector.extract_strided_slice %80 {offsets = [0, 0], sizes = [2, 32], strides = [1, 1]} : vector<2x96xf32> to vector<2x32xf32>
    %82 = vector.extract_strided_slice %80 {offsets = [0, 32], sizes = [2, 32], strides = [1, 1]} : vector<2x96xf32> to vector<2x32xf32>
    %83 = vector.extract_strided_slice %80 {offsets = [0, 64], sizes = [2, 32], strides = [1, 1]} : vector<2x96xf32> to vector<2x32xf32>
    %84 = vector.extract_strided_slice %72 {offsets = [0, 96], sizes = [2, 32], strides = [1, 1]} : vector<2x128xf32> to vector<2x32xf32>
    %85 = math.tanh %84 : vector<2x32xf32>
    %86 = arith.mulf %82, %40 : vector<2x32xf32>
    %87 = arith.mulf %81, %85 : vector<2x32xf32>
    %88 = arith.addf %86, %87 : vector<2x32xf32>
    %89 = math.tanh %88 : vector<2x32xf32>
    %90 = arith.mulf %83, %89 : vector<2x32xf32>
    %91 = tpu.concatenate %90, %66 in 1 : vector<2x32xf32>, vector<2x32xf32> -> vector<2x64xf32>
    %92 = arith.truncf %91 : vector<2x64xf32> to vector<2x64xbf16>
    %cst_34 = arith.constant dense<0.000000e+00> : vector<2x256xf32>
    %93 = tpu.matmul %92, %11, %cst_34 {dimension_numbers = #tpu.dot_dimension_numbers<[1], [0], [0], [1], [0, 0, 1, 1], [], []>} : vector<2x64xbf16>, vector<64x256xbf16>, vector<2x256xf32> -> vector<2x256xf32>
    %94 = vector.extract_strided_slice %93 {offsets = [0, 0], sizes = [2, 128], strides = [1, 1]} : vector<2x256xf32> to vector<2x128xf32>
    %95 = vector.extract_strided_slice %93 {offsets = [0, 128], sizes = [2, 128], strides = [1, 1]} : vector<2x256xf32> to vector<2x128xf32>
    %96 = arith.addf %95, %14 : vector<2x128xf32>
    %97 = vector.extract_strided_slice %96 {offsets = [0, 0], sizes = [2, 96], strides = [1, 1]} : vector<2x128xf32> to vector<2x96xf32>
    %cst_35 = arith.constant 5.000000e-01 : f32
    %98 = vector.broadcast %cst_35 : f32 to vector<2x96xf32>
    %99 = arith.mulf %98, %97 : vector<2x96xf32>
    %100 = math.tanh %99 : vector<2x96xf32>
    %cst_36 = arith.constant 1.000000e+00 : f32
    %101 = vector.broadcast %cst_36 : f32 to vector<2x96xf32>
    %102 = arith.addf %100, %101 : vector<2x96xf32>
    %cst_37 = arith.constant 5.000000e-01 : f32
    %103 = vector.broadcast %cst_37 : f32 to vector<2x96xf32>
    %104 = arith.mulf %103, %102 : vector<2x96xf32>
    %105 = vector.extract_strided_slice %104 {offsets = [0, 0], sizes = [2, 32], strides = [1, 1]} : vector<2x96xf32> to vector<2x32xf32>
    %106 = vector.extract_strided_slice %104 {offsets = [0, 32], sizes = [2, 32], strides = [1, 1]} : vector<2x96xf32> to vector<2x32xf32>
    %107 = vector.extract_strided_slice %104 {offsets = [0, 64], sizes = [2, 32], strides = [1, 1]} : vector<2x96xf32> to vector<2x32xf32>
    %108 = vector.extract_strided_slice %96 {offsets = [0, 96], sizes = [2, 32], strides = [1, 1]} : vector<2x128xf32> to vector<2x32xf32>
    %109 = math.tanh %108 : vector<2x32xf32>
    %110 = arith.mulf %106, %64 : vector<2x32xf32>
    %111 = arith.mulf %105, %109 : vector<2x32xf32>
    %112 = arith.addf %110, %111 : vector<2x32xf32>
    %113 = math.tanh %112 : vector<2x32xf32>
    %114 = arith.mulf %107, %113 : vector<2x32xf32>
    %c1_38 = arith.constant 1 : index
    %c0_39 = arith.constant 0 : index
    %c0_40 = arith.constant 0 : index
    %115 = vector.load %arg6[%c1_38, %c0_39, %c0_40] : memref<4x2x32xf32, #tpu.memory_space<vmem>>, vector<1x2x32xf32>
    %116 = vector.shape_cast %115 : vector<1x2x32xf32> to vector<2x32xf32>
    %117 = vector.shape_cast %114 : vector<2x32xf32> to vector<1x2x32xf32>
    tpu.vector_store %arg6[%c1_38, %c0_39, %c0_40], %117 {strides = array<i32>} : memref<4x2x32xf32, #tpu.memory_space<vmem>>, vector<1x2x32xf32>,
    %118 = vector.extract_strided_slice %10 {offsets = [2, 0, 0], sizes = [1, 2, 128], strides = [1, 1, 1]} : vector<4x2x128xf32> to vector<1x2x128xf32>
    %119 = vector.shape_cast %118 : vector<1x2x128xf32> to vector<2x128xf32>
    %120 = arith.addf %119, %94 : vector<2x128xf32>
    %121 = vector.extract_strided_slice %120 {offsets = [0, 0], sizes = [2, 96], strides = [1, 1]} : vector<2x128xf32> to vector<2x96xf32>
    %cst_41 = arith.constant 5.000000e-01 : f32
    %122 = vector.broadcast %cst_41 : f32 to vector<2x96xf32>
    %123 = arith.mulf %122, %121 : vector<2x96xf32>
    %124 = math.tanh %123 : vector<2x96xf32>
    %cst_42 = arith.constant 1.000000e+00 : f32
    %125 = vector.broadcast %cst_42 : f32 to vector<2x96xf32>
    %126 = arith.addf %124, %125 : vector<2x96xf32>
    %cst_43 = arith.constant 5.000000e-01 : f32
    %127 = vector.broadcast %cst_43 : f32 to vector<2x96xf32>
    %128 = arith.mulf %127, %126 : vector<2x96xf32>
    %129 = vector.extract_strided_slice %128 {offsets = [0, 0], sizes = [2, 32], strides = [1, 1]} : vector<2x96xf32> to vector<2x32xf32>
    %130 = vector.extract_strided_slice %128 {offsets = [0, 32], sizes = [2, 32], strides = [1, 1]} : vector<2x96xf32> to vector<2x32xf32>
    %131 = vector.extract_strided_slice %128 {offsets = [0, 64], sizes = [2, 32], strides = [1, 1]} : vector<2x96xf32> to vector<2x32xf32>
    %132 = vector.extract_strided_slice %120 {offsets = [0, 96], sizes = [2, 32], strides = [1, 1]} : vector<2x128xf32> to vector<2x32xf32>
    %133 = math.tanh %132 : vector<2x32xf32>
    %134 = arith.mulf %130, %88 : vector<2x32xf32>
    %135 = arith.mulf %129, %133 : vector<2x32xf32>
    %136 = arith.addf %134, %135 : vector<2x32xf32>
    %137 = math.tanh %136 : vector<2x32xf32>
    %138 = arith.mulf %131, %137 : vector<2x32xf32>
    %139 = tpu.concatenate %138, %114 in 1 : vector<2x32xf32>, vector<2x32xf32> -> vector<2x64xf32>
    %140 = arith.truncf %139 : vector<2x64xf32> to vector<2x64xbf16>
    %cst_44 = arith.constant dense<0.000000e+00> : vector<2x256xf32>
    %141 = tpu.matmul %140, %11, %cst_44 {dimension_numbers = #tpu.dot_dimension_numbers<[1], [0], [0], [1], [0, 0, 1, 1], [], []>} : vector<2x64xbf16>, vector<64x256xbf16>, vector<2x256xf32> -> vector<2x256xf32>
    %142 = vector.extract_strided_slice %141 {offsets = [0, 0], sizes = [2, 128], strides = [1, 1]} : vector<2x256xf32> to vector<2x128xf32>
    %143 = vector.extract_strided_slice %141 {offsets = [0, 128], sizes = [2, 128], strides = [1, 1]} : vector<2x256xf32> to vector<2x128xf32>
    %144 = arith.addf %143, %14 : vector<2x128xf32>
    %145 = vector.extract_strided_slice %144 {offsets = [0, 0], sizes = [2, 96], strides = [1, 1]} : vector<2x128xf32> to vector<2x96xf32>
    %cst_45 = arith.constant 5.000000e-01 : f32
    %146 = vector.broadcast %cst_45 : f32 to vector<2x96xf32>
    %147 = arith.mulf %146, %145 : vector<2x96xf32>
    %148 = math.tanh %147 : vector<2x96xf32>
    %cst_46 = arith.constant 1.000000e+00 : f32
    %149 = vector.broadcast %cst_46 : f32 to vector<2x96xf32>
    %150 = arith.addf %148, %149 : vector<2x96xf32>
    %cst_47 = arith.constant 5.000000e-01 : f32
    %151 = vector.broadcast %cst_47 : f32 to vector<2x96xf32>
    %152 = arith.mulf %151, %150 : vector<2x96xf32>
    %153 = vector.extract_strided_slice %152 {offsets = [0, 0], sizes = [2, 32], strides = [1, 1]} : vector<2x96xf32> to vector<2x32xf32>
    %154 = vector.extract_strided_slice %152 {offsets = [0, 32], sizes = [2, 32], strides = [1, 1]} : vector<2x96xf32> to vector<2x32xf32>
    %155 = vector.extract_strided_slice %152 {offsets = [0, 64], sizes = [2, 32], strides = [1, 1]} : vector<2x96xf32> to vector<2x32xf32>
    %156 = vector.extract_strided_slice %144 {offsets = [0, 96], sizes = [2, 32], strides = [1, 1]} : vector<2x128xf32> to vector<2x32xf32>
    %157 = math.tanh %156 : vector<2x32xf32>
    %158 = arith.mulf %154, %112 : vector<2x32xf32>
    %159 = arith.mulf %153, %157 : vector<2x32xf32>
    %160 = arith.addf %158, %159 : vector<2x32xf32>
    %161 = math.tanh %160 : vector<2x32xf32>
    %162 = arith.mulf %155, %161 : vector<2x32xf32>
    %c2 = arith.constant 2 : index
    %c0_48 = arith.constant 0 : index
    %c0_49 = arith.constant 0 : index
    %163 = vector.load %arg6[%c2, %c0_48, %c0_49] : memref<4x2x32xf32, #tpu.memory_space<vmem>>, vector<1x2x32xf32>
    %164 = vector.shape_cast %163 : vector<1x2x32xf32> to vector<2x32xf32>
    %165 = vector.shape_cast %162 : vector<2x32xf32> to vector<1x2x32xf32>
    tpu.vector_store %arg6[%c2, %c0_48, %c0_49], %165 {strides = array<i32>} : memref<4x2x32xf32, #tpu.memory_space<vmem>>, vector<1x2x32xf32>,
    %166 = vector.extract_strided_slice %10 {offsets = [3, 0, 0], sizes = [1, 2, 128], strides = [1, 1, 1]} : vector<4x2x128xf32> to vector<1x2x128xf32>
    %167 = vector.shape_cast %166 : vector<1x2x128xf32> to vector<2x128xf32>
    %168 = arith.addf %167, %142 : vector<2x128xf32>
    %169 = vector.extract_strided_slice %168 {offsets = [0, 0], sizes = [2, 96], strides = [1, 1]} : vector<2x128xf32> to vector<2x96xf32>
    %cst_50 = arith.constant 5.000000e-01 : f32
    %170 = vector.broadcast %cst_50 : f32 to vector<2x96xf32>
    %171 = arith.mulf %170, %169 : vector<2x96xf32>
    %172 = math.tanh %171 : vector<2x96xf32>
    %cst_51 = arith.constant 1.000000e+00 : f32
    %173 = vector.broadcast %cst_51 : f32 to vector<2x96xf32>
    %174 = arith.addf %172, %173 : vector<2x96xf32>
    %cst_52 = arith.constant 5.000000e-01 : f32
    %175 = vector.broadcast %cst_52 : f32 to vector<2x96xf32>
    %176 = arith.mulf %175, %174 : vector<2x96xf32>
    %177 = vector.extract_strided_slice %176 {offsets = [0, 0], sizes = [2, 32], strides = [1, 1]} : vector<2x96xf32> to vector<2x32xf32>
    %178 = vector.extract_strided_slice %176 {offsets = [0, 32], sizes = [2, 32], strides = [1, 1]} : vector<2x96xf32> to vector<2x32xf32>
    %179 = vector.extract_strided_slice %176 {offsets = [0, 64], sizes = [2, 32], strides = [1, 1]} : vector<2x96xf32> to vector<2x32xf32>
    %180 = vector.extract_strided_slice %168 {offsets = [0, 96], sizes = [2, 32], strides = [1, 1]} : vector<2x128xf32> to vector<2x32xf32>
    %181 = math.tanh %180 : vector<2x32xf32>
    %182 = arith.mulf %178, %136 : vector<2x32xf32>
    %183 = arith.mulf %177, %181 : vector<2x32xf32>
    %184 = arith.addf %182, %183 : vector<2x32xf32>
    %185 = math.tanh %184 : vector<2x32xf32>
    %186 = arith.mulf %179, %185 : vector<2x32xf32>
    %187 = tpu.concatenate %186, %162 in 1 : vector<2x32xf32>, vector<2x32xf32> -> vector<2x64xf32>
    %188 = arith.truncf %187 : vector<2x64xf32> to vector<2x64xbf16>
    %cst_53 = arith.constant dense<0.000000e+00> : vector<2x256xf32>
    %189 = tpu.matmul %188, %11, %cst_53 {dimension_numbers = #tpu.dot_dimension_numbers<[1], [0], [0], [1], [0, 0, 1, 1], [], []>} : vector<2x64xbf16>, vector<64x256xbf16>, vector<2x256xf32> -> vector<2x256xf32>
    %190 = vector.extract_strided_slice %189 {offsets = [0, 0], sizes = [2, 128], strides = [1, 1]} : vector<2x256xf32> to vector<2x128xf32>
    %191 = vector.extract_strided_slice %189 {offsets = [0, 128], sizes = [2, 128], strides = [1, 1]} : vector<2x256xf32> to vector<2x128xf32>
    %192 = arith.addf %191, %14 : vector<2x128xf32>
    %193 = vector.extract_strided_slice %192 {offsets = [0, 0], sizes = [2, 96], strides = [1, 1]} : vector<2x128xf32> to vector<2x96xf32>
    %cst_54 = arith.constant 5.000000e-01 : f32
    %194 = vector.broadcast %cst_54 : f32 to vector<2x96xf32>
    %195 = arith.mulf %194, %193 : vector<2x96xf32>
    %196 = math.tanh %195 : vector<2x96xf32>
    %cst_55 = arith.constant 1.000000e+00 : f32
    %197 = vector.broadcast %cst_55 : f32 to vector<2x96xf32>
    %198 = arith.addf %196, %197 : vector<2x96xf32>
    %cst_56 = arith.constant 5.000000e-01 : f32
    %199 = vector.broadcast %cst_56 : f32 to vector<2x96xf32>
    %200 = arith.mulf %199, %198 : vector<2x96xf32>
    %201 = vector.extract_strided_slice %200 {offsets = [0, 0], sizes = [2, 32], strides = [1, 1]} : vector<2x96xf32> to vector<2x32xf32>
    %202 = vector.extract_strided_slice %200 {offsets = [0, 32], sizes = [2, 32], strides = [1, 1]} : vector<2x96xf32> to vector<2x32xf32>
    %203 = vector.extract_strided_slice %200 {offsets = [0, 64], sizes = [2, 32], strides = [1, 1]} : vector<2x96xf32> to vector<2x32xf32>
    %204 = vector.extract_strided_slice %192 {offsets = [0, 96], sizes = [2, 32], strides = [1, 1]} : vector<2x128xf32> to vector<2x32xf32>
    %205 = math.tanh %204 : vector<2x32xf32>
    %206 = arith.mulf %202, %160 : vector<2x32xf32>
    %207 = arith.mulf %201, %205 : vector<2x32xf32>
    %208 = arith.addf %206, %207 : vector<2x32xf32>
    %209 = math.tanh %208 : vector<2x32xf32>
    %210 = arith.mulf %203, %209 : vector<2x32xf32>
    %c3 = arith.constant 3 : index
    %c0_57 = arith.constant 0 : index
    %c0_58 = arith.constant 0 : index
    %211 = vector.load %arg6[%c3, %c0_57, %c0_58] : memref<4x2x32xf32, #tpu.memory_space<vmem>>, vector<1x2x32xf32>
    %212 = vector.shape_cast %211 : vector<1x2x32xf32> to vector<2x32xf32>
    %213 = vector.shape_cast %210 : vector<2x32xf32> to vector<1x2x32xf32>
    tpu.vector_store %arg6[%c3, %c0_57, %c0_58], %213 {strides = array<i32>} : memref<4x2x32xf32, #tpu.memory_space<vmem>>, vector<1x2x32xf32>,
    %c0_59 = arith.constant 0 : index
    %c0_60 = arith.constant 0 : index
    %c0_61 = arith.constant 0 : index
    %214 = vector.load %arg7[%c0_59, %c0_60, %c0_61] : memref<2x2x32xf32, #tpu.memory_space<vmem>>, vector<1x2x32xf32>
    %215 = vector.shape_cast %214 : vector<1x2x32xf32> to vector<2x32xf32>
    %216 = vector.shape_cast %186 : vector<2x32xf32> to vector<1x2x32xf32>
    tpu.vector_store %arg7[%c0_59, %c0_60, %c0_61], %216 {strides = array<i32>} : memref<2x2x32xf32, #tpu.memory_space<vmem>>, vector<1x2x32xf32>,
    %c1_62 = arith.constant 1 : index
    %c0_63 = arith.constant 0 : index
    %c0_64 = arith.constant 0 : index
    %217 = vector.load %arg7[%c1_62, %c0_63, %c0_64] : memref<2x2x32xf32, #tpu.memory_space<vmem>>, vector<1x2x32xf32>
    %218 = vector.shape_cast %217 : vector<1x2x32xf32> to vector<2x32xf32>
    %219 = vector.shape_cast %210 : vector<2x32xf32> to vector<1x2x32xf32>
    tpu.vector_store %arg7[%c1_62, %c0_63, %c0_64], %219 {strides = array<i32>} : memref<2x2x32xf32, #tpu.memory_space<vmem>>, vector<1x2x32xf32>,
    %c0_65 = arith.constant 0 : index
    %c0_66 = arith.constant 0 : index
    %c0_67 = arith.constant 0 : index
    %220 = vector.load %arg8[%c0_65, %c0_66, %c0_67] : memref<2x2x32xf32, #tpu.memory_space<vmem>>, vector<1x2x32xf32>
    %221 = vector.shape_cast %220 : vector<1x2x32xf32> to vector<2x32xf32>
    %222 = vector.shape_cast %184 : vector<2x32xf32> to vector<1x2x32xf32>
    tpu.vector_store %arg8[%c0_65, %c0_66, %c0_67], %222 {strides = array<i32>} : memref<2x2x32xf32, #tpu.memory_space<vmem>>, vector<1x2x32xf32>,
    %c1_68 = arith.constant 1 : index
    %c0_69 = arith.constant 0 : index
    %c0_70 = arith.constant 0 : index
    %223 = vector.load %arg8[%c1_68, %c0_69, %c0_70] : memref<2x2x32xf32, #tpu.memory_space<vmem>>, vector<1x2x32xf32>
    %224 = vector.shape_cast %223 : vector<1x2x32xf32> to vector<2x32xf32>
    %225 = vector.shape_cast %208 : vector<2x32xf32> to vector<1x2x32xf32>
    tpu.vector_store %arg8[%c1_68, %c0_69, %c0_70], %225 {strides = array<i32>} : memref<2x2x32xf32, #tpu.memory_space<vmem>>, vector<1x2x32xf32>,
    %c0_71 = arith.constant 0 : index
    %c0_72 = arith.constant 0 : index
    %226 = vector.load %arg9[%c0_71, %c0_72] : memref<2x128xf32, #tpu.memory_space<vmem>>, vector<2x128xf32>
    tpu.vector_store %arg9[%c0_71, %c0_72], %190 {strides = array<i32>} : memref<2x128xf32, #tpu.memory_space<vmem>>, vector<2x128xf32>,
    return
  }
  func.func @transform_0(%arg0: i32) -> (i32, i32, i32) {
    %c0_i32 = arith.constant 0 : i32
    %c0_i32_0 = arith.constant 0 : i32
    %c0_i32_1 = arith.constant 0 : i32
    return %arg0, %c0_i32, %c0_i32_0 : i32, i32, i32
  }
  func.func @transform_1(%arg0: i32) -> (i32, i32) {
    %c0_i32 = arith.constant 0 : i32
    %c0_i32_0 = arith.constant 0 : i32
    %c0_i32_1 = arith.constant 0 : i32
    return %c0_i32, %c0_i32_0 : i32, i32
  }
  func.func @transform_2(%arg0: i32) -> (i32, i32) {
    %c0_i32 = arith.constant 0 : i32
    %c0_i32_0 = arith.constant 0 : i32
    %c0_i32_1 = arith.constant 0 : i32
    return %c0_i32, %c0_i32_0 : i32, i32
  }
  func.func @transform_3(%arg0: i32) -> (i32, i32) {
    %c0_i32 = arith.constant 0 : i32
    %c0_i32_0 = arith.constant 0 : i32
    %c0_i32_1 = arith.constant 0 : i32
    return %c0_i32, %c0_i32_0 : i32, i32
  }
  func.func @transform_4(%arg0: i32) -> (i32, i32) {
    %c0_i32 = arith.constant 0 : i32
    %c0_i32_0 = arith.constant 0 : i32
    %c0_i32_1 = arith.constant 0 : i32
    return %c0_i32, %c0_i32_0 : i32, i32
  }
  func.func @transform_5(%arg0: i32) -> (i32, i32, i32) {
    %c0_i32 = arith.constant 0 : i32
    %c0_i32_0 = arith.constant 0 : i32
    %c0_i32_1 = arith.constant 0 : i32
    return %arg0, %c0_i32, %c0_i32_0 : i32, i32, i32
  }
  func.func @transform_6(%arg0: i32) -> (i32, i32, i32) {
    %c0_i32 = arith.constant 0 : i32
    %c0_i32_0 = arith.constant 0 : i32
    %c0_i32_1 = arith.constant 0 : i32
    %c0_i32_2 = arith.constant 0 : i32
    return %c0_i32, %c0_i32_0, %c0_i32_1 : i32, i32, i32
  }
  func.func @transform_7(%arg0: i32) -> (i32, i32, i32) {
    %c0_i32 = arith.constant 0 : i32
    %c0_i32_0 = arith.constant 0 : i32
    %c0_i32_1 = arith.constant 0 : i32
    %c0_i32_2 = arith.constant 0 : i32
    return %c0_i32, %c0_i32_0, %c0_i32_1 : i32, i32, i32
  }
}

</mosaic_0001>

<llo_original>
// kernel: encoder_forward.1
$region0: #{encoder_forward.1}
  #allocation0 [shape = 'u32[]', space=smem, size = 0x4, offset = 0x4, fixed_abs, tag = 'smem constant byte address 0x4 - core index']
  #allocation1 [shape = 'u32[72,128]{1,0:T(1,128)}', space=vmem, size = 0x9000, scoped, tag = 'internal scratch']
  #allocation2 [shape = 'f32[2,128]{1,0:T(2,128)}', space=vmem, size = 0x400, scoped, tag = 'scratch operand']
  %s0 = inlined_call_operand.vmem [shape: bf16[8,2,16], index: 0, kind: input, shape index: {}]
  %s1 = inlined_call_operand.vmem [shape: bf16[16,128], index: 1, kind: input, shape index: {}]
  %s2 = inlined_call_operand.vmem [shape: f32[1,128], index: 2, kind: input, shape index: {}]
  %s3 = inlined_call_operand.vmem [shape: bf16[64,256], index: 3, kind: input, shape index: {}]
  %s4 = inlined_call_operand.vmem [shape: f32[1,128], index: 4, kind: input, shape index: {}]
  %s5 = inlined_call_operand.vmem [shape: f32[8,2,32], index: 5, kind: output, shape index: {0}]
  %s6 = inlined_call_operand.hbm [shape: f32[2,2,32], index: 6, kind: output, shape index: {1}]
  %s7 = inlined_call_operand.hbm [shape: f32[2,2,32], index: 7, kind: output, shape index: {2}]
  %8 = xla_tuple %s5, %s6, %s7
  %s9 = sld [smem:[#allocation0]]
  $region73: #{encoder_forward.1} parent=0
    _
  %s11 = ssub.s32 1, %s9
  %s12 = scalar_select 0, %s11, %s9
  $region1: #{encoder_forward.1} parent=0
    #allocation3 [shape = 'u8[2048]{0}', space=vmem, size = 0x800, scoped, tag = 'output window, operand 1, single buffered']
    #allocation4 [shape = 's32[2]{0}', space=sflag, size = 0x8, scoped, tag = 'scoped memory for encoder_forward.1']
    #allocation5 [shape = 'u8[2048]{0}', space=vmem, size = 0x800, scoped, tag = 'output window, operand 2, single buffered']
    #allocation6 [shape = 's32[1]{0}', space=sflag, size = 0x4, scoped, tag = 'scoped memory for encoder_forward.1']
    %13 = vsyncpa [#allocation4], 0
    %14 = vsyncpa [#allocation6], 0
    loop: start=0, step=1, limit=4
    $region2: #{encoder_forward.1} parent=1 // loop_pre_header
      _
    $region3: #{encoder_forward.1} parent=1 // loop_header
      %s16 = sphi 0, %s20
      %p17 = scmp.ge.s32.totalorder %s16, 4
      %s26 = sphi 0, %s28
      %s29 = sphi 0, %s26
      %s30 = sphi 0, %s29
      %s46 = sphi 0, %s30
      %s50 = sphi 0, %s50
      %s52 = sphi 0, %s50
      %s53 = sphi 0, %s52
      %s67 = sphi 0, %s53
      %s71 = sphi 0, %s71
      %s73 = sphi 0, %s71
      %s74 = sphi 0, %s73
      %s88 = sphi 0, %s74
      %s92 = sphi 0, %s92
      %s94 = sphi 0, %s92
      %s95 = sphi 0, %s94
      %s109 = sphi 0, %s95
      %s113 = sphi 0, %s113
      %s115 = sphi 0, %s113
      %s116 = sphi 0, %s115
      %s130 = sphi 0, %s116
      %s136 = sphi 0, %s138
      %s139 = sphi 0, %s136
      %s140 = sphi 0, %s139
      %s156 = sphi 0, %s140
      %s160 = sphi 0, %s160
      %s162 = sphi 0, %s160
      %s163 = sphi 0, %s162
      %s177 = sphi 0, %s163
      %s181 = sphi 0, %s181
      %s183 = sphi 0, %s181
      %s184 = sphi 0, %s183
      %s198 = sphi 0, %s184
    $region4: #{encoder_forward.1} parent=1 // loop_header_branch
      %19 = sbr.rel (%p17) target = $region8
    $region5: #{encoder_forward.1} parent=1 // loop_body
      %s21 = ssub.s32 %s16, 1
      %s22 = ssub.s32 %s16, 2
      %s23 = sadd.s32 %s16, 1
      %s24 = ssub.s32 %s16, %s23
      %p25 = scmp.eq.s32.totalorder %s24, 0
      %s27 = sadd.s32 %s26, 1
      %s28 = scalar_select %p25, %s26, %s27
      %p31 = pneg %p25
      %p32 = scmp.eq.s32.totalorder %s16, 1
      %p33 = por %p31, %p32
      %p34 = scmp.ne.s32.totalorder %s26, %s29
      %p35 = scmp.eq.s32.totalorder %s16, 0
      %p36 = por %p34, %p35
      %p37 = scmp.ne.s32.totalorder %s26, %s29
      %p38 = scmp.eq.s32.totalorder %s21, 1
      %p39 = por %p37, %p38
      %p40 = scmp.ne.s32.totalorder %s29, %s30
      %p41 = scmp.eq.s32.totalorder %s21, 0
      %p42 = por %p40, %p41
      %p43 = scmp.ne.s32.totalorder %s29, %s30
      %p44 = scmp.eq.s32.totalorder %s22, 1
      %p45 = por %p43, %p44
      %p47 = scmp.ne.s32.totalorder %s30, %s46
      %p48 = scmp.eq.s32.totalorder %s22, 0
      %p49 = por %p47, %p48
      %s51 = sadd.s32 %s50, 1
      %p54 = scmp.eq.s32.totalorder %s16, 1
      %p55 = scmp.ne.s32.totalorder %s50, %s52
      %p56 = scmp.eq.s32.totalorder %s16, 0
      %p57 = por %p55, %p56
      %p58 = scmp.ne.s32.totalorder %s50, %s52
      %p59 = scmp.eq.s32.totalorder %s21, 1
      %p60 = por %p58, %p59
      %p61 = scmp.ne.s32.totalorder %s52, %s53
      %p62 = scmp.eq.s32.totalorder %s21, 0
      %p63 = por %p61, %p62
      %p64 = scmp.ne.s32.totalorder %s52, %s53
      %p65 = scmp.eq.s32.totalorder %s22, 1
      %p66 = por %p64, %p65
      %p68 = scmp.ne.s32.totalorder %s53, %s67
      %p69 = scmp.eq.s32.totalorder %s22, 0
      %p70 = por %p68, %p69
      %s72 = sadd.s32 %s71, 1
      %p75 = scmp.eq.s32.totalorder %s16, 1
      %p76 = scmp.ne.s32.totalorder %s71, %s73
      %p77 = scmp.eq.s32.totalorder %s16, 0
      %p78 = por %p76, %p77
      %p79 = scmp.ne.s32.totalorder %s71, %s73
      %p80 = scmp.eq.s32.totalorder %s21, 1
      %p81 = por %p79, %p80
      %p82 = scmp.ne.s32.totalorder %s73, %s74
      %p83 = scmp.eq.s32.totalorder %s21, 0
      %p84 = por %p82, %p83
      %p85 = scmp.ne.s32.totalorder %s73, %s74
      %p86 = scmp.eq.s32.totalorder %s22, 1
      %p87 = por %p85, %p86
      %p89 = scmp.ne.s32.totalorder %s74, %s88
      %p90 = scmp.eq.s32.totalorder %s22, 0
      %p91 = por %p89, %p90
      %s93 = sadd.s32 %s92, 1
      %p96 = scmp.eq.s32.totalorder %s16, 1
      %p97 = scmp.ne.s32.totalorder %s92, %s94
      %p98 = scmp.eq.s32.totalorder %s16, 0
      %p99 = por %p97, %p98
      %p100 = scmp.ne.s32.totalorder %s92, %s94
      %p101 = scmp.eq.s32.totalorder %s21, 1
      %p102 = por %p100, %p101
      %p103 = scmp.ne.s32.totalorder %s94, %s95
      %p104 = scmp.eq.s32.totalorder %s21, 0
      %p105 = por %p103, %p104
      %p106 = scmp.ne.s32.totalorder %s94, %s95
      %p107 = scmp.eq.s32.totalorder %s22, 1
      %p108 = por %p106, %p107
      %p110 = scmp.ne.s32.totalorder %s95, %s109
      %p111 = scmp.eq.s32.totalorder %s22, 0
      %p112 = por %p110, %p111
      %s114 = sadd.s32 %s113, 1
      %p117 = scmp.eq.s32.totalorder %s16, 1
      %p118 = scmp.ne.s32.totalorder %s113, %s115
      %p119 = scmp.eq.s32.totalorder %s16, 0
      %p120 = por %p118, %p119
      %p121 = scmp.ne.s32.totalorder %s113, %s115
      %p122 = scmp.eq.s32.totalorder %s21, 1
      %p123 = por %p121, %p122
      %p124 = scmp.ne.s32.totalorder %s115, %s116
      %p125 = scmp.eq.s32.totalorder %s21, 0
      %p126 = por %p124, %p125
      %p127 = scmp.ne.s32.totalorder %s115, %s116
      %p128 = scmp.eq.s32.totalorder %s22, 1
      %p129 = por %p127, %p128
      %p131 = scmp.ne.s32.totalorder %s116, %s130
      %p132 = scmp.eq.s32.totalorder %s22, 0
      %p133 = por %p131, %p132
      %s134 = ssub.s32 %s16, %s23
      %p135 = scmp.eq.s32.totalorder %s134, 0
      %s137 = sadd.s32 %s136, 1
      %s138 = scalar_select %p135, %s136, %s137
      %p141 = pneg %p135
      %p142 = scmp.eq.s32.totalorder %s16, 1
      %p143 = por %p141, %p142
      %p144 = scmp.ne.s32.totalorder %s136, %s139
      %p145 = scmp.eq.s32.totalorder %s16, 0
      %p146 = por %p144, %p145
      %p147 = scmp.ne.s32.totalorder %s136, %s139
      %p148 = scmp.eq.s32.totalorder %s21, 1
      %p149 = por %p147, %p148
      %p150 = scmp.ne.s32.totalorder %s139, %s140
      %p151 = scmp.eq.s32.totalorder %s21, 0
      %p152 = por %p150, %p151
      %p153 = scmp.ne.s32.totalorder %s139, %s140
      %p154 = scmp.eq.s32.totalorder %s22, 1
      %p155 = por %p153, %p154
      %p157 = scmp.ne.s32.totalorder %s140, %s156
      %p158 = scmp.eq.s32.totalorder %s22, 0
      %p159 = por %p157, %p158
      %s161 = sadd.s32 %s160, 1
      %p164 = scmp.eq.s32.totalorder %s16, 1
      %p165 = scmp.ne.s32.totalorder %s160, %s162
      %p166 = scmp.eq.s32.totalorder %s16, 0
      %p167 = por %p165, %p166
      %p168 = scmp.ne.s32.totalorder %s160, %s162
      %p169 = scmp.eq.s32.totalorder %s21, 1
      %p170 = por %p168, %p169
      %p171 = scmp.ne.s32.totalorder %s162, %s163
      %p172 = scmp.eq.s32.totalorder %s21, 0
      %p173 = por %p171, %p172
      %p174 = scmp.ne.s32.totalorder %s162, %s163
      %p175 = scmp.eq.s32.totalorder %s22, 1
      %p176 = por %p174, %p175
      %p178 = scmp.ne.s32.totalorder %s163, %s177
      %p179 = scmp.eq.s32.totalorder %s22, 0
      %p180 = por %p178, %p179
      %s182 = sadd.s32 %s181, 1
      %p185 = scmp.eq.s32.totalorder %s16, 1
      %p186 = scmp.ne.s32.totalorder %s181, %s183
      %p187 = scmp.eq.s32.totalorder %s16, 0
      %p188 = por %p186, %p187
      %p189 = scmp.ne.s32.totalorder %s181, %s183
      %p190 = scmp.eq.s32.totalorder %s21, 1
      %p191 = por %p189, %p190
      %p192 = scmp.ne.s32.totalorder %s183, %s184
      %p193 = scmp.eq.s32.totalorder %s21, 0
      %p194 = por %p192, %p193
      %p195 = scmp.ne.s32.totalorder %s183, %s184
      %p196 = scmp.eq.s32.totalorder %s22, 1
      %p197 = por %p195, %p196
      %p199 = scmp.ne.s32.totalorder %s184, %s198
      %p200 = scmp.eq.s32.totalorder %s22, 0
      %p201 = por %p199, %p200
      %p202 = scmp.le.s32.totalorder 1, %s16
      %p203 = scmp.lt.s32.totalorder %s16, 3
      %p204 = pnand %p202, %p203
      %p205 = pneg %p204
      // Predicated region
      $region9: #{encoder_forward.1} parent=5 // pred_check
        _
      $region10: #{encoder_forward.1} parent=5 // pred_check_branch
        %207 = sbr.rel (%p204) target = $region12
      $region11: #{encoder_forward.1} parent=5 // pred_region
        %s208 = ssub.s32 %s16, 1
        // Predicated region
        $region13: #{encoder_forward.1} parent=11 // pred_check
          %p209 = pneg %p63
        $region14: #{encoder_forward.1} parent=11 // pred_check_branch
          %211 = sbr.rel (%p209) target = $region16
        $region15: #{encoder_forward.1} parent=11 // pred_region
          _
        $region16: #{encoder_forward.1} parent=11 // pred_fallthru
          _
        // Predicated region
        $region17: #{encoder_forward.1} parent=11 // pred_check
          %p212 = pneg %p84
        $region18: #{encoder_forward.1} parent=11 // pred_check_branch
          %214 = sbr.rel (%p212) target = $region20
        $region19: #{encoder_forward.1} parent=11 // pred_region
          _
        $region20: #{encoder_forward.1} parent=11 // pred_fallthru
          _
        // Predicated region
        $region21: #{encoder_forward.1} parent=11 // pred_check
          %p215 = pneg %p105
        $region22: #{encoder_forward.1} parent=11 // pred_check_branch
          %217 = sbr.rel (%p215) target = $region24
        $region23: #{encoder_forward.1} parent=11 // pred_region
          _
        $region24: #{encoder_forward.1} parent=11 // pred_fallthru
          _
        // Predicated region
        $region25: #{encoder_forward.1} parent=11 // pred_check
          %p218 = pneg %p126
        $region26: #{encoder_forward.1} parent=11 // pred_check_branch
          %220 = sbr.rel (%p218) target = $region28
        $region27: #{encoder_forward.1} parent=11 // pred_region
          _
        $region28: #{encoder_forward.1} parent=11 // pred_fallthru
          _
      $region12: #{encoder_forward.1} parent=5 // pred_fallthru
        _
      %p221 = scmp.lt.s32.totalorder %s16, 2
      // Predicated region
      $region29: #{encoder_forward.1} parent=5 // pred_check
        %p222 = pneg %p221
      $region30: #{encoder_forward.1} parent=5 // pred_check_branch
        %224 = sbr.rel (%p222) target = $region32
      $region31: #{encoder_forward.1} parent=5 // pred_region
        // Predicated region
        $region33: #{encoder_forward.1} parent=31 // pred_check
          %p225 = pneg %p36
        $region34: #{encoder_forward.1} parent=31 // pred_check_branch
          %227 = sbr.rel (%p225) target = $region36
        $region35: #{encoder_forward.1} parent=31 // pred_region
          %s228 = smul.u32 4, %s16
          %p229 = scmp.lt.s32.totalorder %s228, 7
          %s230 = scalar_select %p229, %s228, 7
          %s231 = scalar_lea.vmem %s0, %s230
          %s232 = smul.u32 4, %s16
        $region36: #{encoder_forward.1} parent=31 // pred_fallthru
          _
      $region32: #{encoder_forward.1} parent=5 // pred_fallthru
        _
      %p233 = scmp.le.s32.totalorder 1, %s16
      %p234 = scmp.lt.s32.totalorder %s16, 3
      %p235 = pnand %p233, %p234
      %p236 = pneg %p235
      // Predicated region
      $region37: #{encoder_forward.1} parent=5 // pred_check
        _
      $region38: #{encoder_forward.1} parent=5 // pred_check_branch
        %238 = sbr.rel (%p235) target = $region40
      $region39: #{encoder_forward.1} parent=5 // pred_region
        %s239 = ssub.s32 %s16, 1
        %s240 = smul.u32 4, %s21
        %p241 = scmp.lt.s32.totalorder %s240, 7
        %s242 = scalar_select %p241, %s240, 7
        %s243 = scalar_lea.vmem %s0, %s242
        %p244 = pneg %p42
        %p245 = pneg %p39
        %p246 = pneg %p63
        %p247 = pneg %p60
        %p248 = pneg %p84
        %p249 = pneg %p81
        %p250 = pneg %p105
        %p251 = pneg %p102
        %p252 = pneg %p126
        %p253 = pneg %p123
        %p254 = pneg %p152
        %p255 = pneg %p149
        %s256 = smul.u32 4, %s21
        %p257 = scmp.lt.s32.totalorder %s256, 7
        %s258 = scalar_select %p257, %s256, 7
        %s259 = smul.addr %s258, 2
        %s260 = scalar_lea.vmem %s5, %s259
        %p261 = pneg %p173
        %p262 = pneg %p170
        %p263 = pneg %p194
        %p264 = pneg %p191
        %s265 = smul.u32 4, %s21
        %p266 = scmp.lt.s32.totalorder %s265, 7
        %s267 = scalar_select %p266, %s265, 7
        %s268 = scalar_lea.vmem %s0, %s267
        %s269 = smul.u32 4, %s21
        %s270 = smul.u32 4, %s21
        %p271 = scmp.lt.s32.totalorder %s270, 7
        %s272 = scalar_select %p271, %s270, 7
        %s273 = smul.addr %s272, 2
        %s274 = scalar_lea.vmem %s5, %s273
        %s275 = smul.u32 4, %s21
        %p277 = scmp.eq.s32.totalorder %s21, 0
        // Predicated region
        $region41: #{encoder_forward.1} parent=39 // pred_check
          %p278 = pneg %p277
        $region42: #{encoder_forward.1} parent=39 // pred_check_branch
          %280 = sbr.rel (%p278) target = $region44
        $region43: #{encoder_forward.1} parent=39 // pred_region
          %vm281 = vcmask 254976
          %282 = vst.msk [vmem:[#allocation3] sm:$0x3] %vm281, 0.0
          %283 = vst.msk [vmem:[#allocation3 + $0x2] sm:$0x3] %vm281, 0.0
          %284 = vst.msk [vmem:[#allocation5] sm:$0x3] %vm281, 0.0
          %285 = vst.msk [vmem:[#allocation5 + $0x2] sm:$0x3] %vm281, 0.0
          %286 = vst [vmem:[#allocation2] sm:$0x3] 0.0
        $region44: #{encoder_forward.1} parent=39 // pred_fallthru
          _
        %v287 = vld [vmem:[%s268] sm:$0x1]
        %v288 = vld [vmem:[%s268 + $0x1] sm:$0x1]
        %v289 = vld [vmem:[%s268 + $0x2] sm:$0x1]
        %v290 = vld [vmem:[%s268 + $0x3] sm:$0x1]
        %v291 = vld [vmem:[%s1] sm:$0xf]
        %v292 = vld [vmem:[%s1 + $0x4] sm:$0xf]
        %v293 = vld [vmem:[%s2] sm:$0x1]
        %v295 = vperm.slane %v293, 0
        %298 = vst [vmem:[#allocation1] ss:$9 sm:$0xff] %v287
        %s300 = scalar_lea.vmem [#allocation1], 1
        %301 = vst [vmem:[%s300] ss:$9 sm:$0xff] %v288
        %s303 = scalar_lea.vmem [#allocation1], 2
        %304 = vst [vmem:[%s303] ss:$9 sm:$0xff] %v289
        %s306 = scalar_lea.vmem [#allocation1], 3
        %307 = vst [vmem:[%s306] ss:$9 sm:$0xff] %v290
        %v308 = vld [vmem:[#allocation1] sm:$0xff]
        %v311 = vunpack.c.l.b16 %v291
        %v312 = vunpack.c.l.b16 %v292
        %v313 = vpack.c.b16 %v312, %v311
        %vm315 = vcmask 130048
        %v316 = vsel %vm315, %v308, 0
        %318 = vmatpush.bf16.msra.mxu0 0
        %319 = vmatpush.bf16.msra.mxu0 0
        %320 = vmatpush.bf16.msra.mxu0 0
        %321 = vmatpush.bf16.msra.mxu0 0
        %322 = vmatpush.bf16.msra.mxu0 0
        %323 = vmatpush.bf16.msra.mxu0 0
        %324 = vmatpush.bf16.msra.mxu0 0
        %325 = vmatpush.bf16.msra.mxu0 %v313
        %326 = vmatmul.bf16.gmra.mxu0 %v316
        %v327 = vpop.f32.mrf.mxu0
        %v328 = vadd.f32 %v295, %v327
        %v329 = vpop.f32.mrf.mxu0
        %330 = vdwg.mxu0
        %v332 = vrot.slane %v328, 2
        %v333 = vrot.slane %v328, 4
        %v334 = vrot.slane %v328, 6
        %v338 = vld [vmem:[%s3] sm:$0xff]
        %v339 = vld [vmem:[%s3 + $0x8] sm:$0xff]
        %v340 = vld [vmem:[%s3 + $0x10] sm:$0xff]
        %v341 = vld [vmem:[%s3 + $0x18] sm:$0xff]
        %v342 = vld [vmem:[%s3 + $0x20] sm:$0xff]
        %v343 = vld [vmem:[%s3 + $0x28] sm:$0xff]
        %v344 = vld [vmem:[%s3 + $0x30] sm:$0xff]
        %v345 = vld [vmem:[%s3 + $0x38] sm:$0xff]
        %v346 = vld [vmem:[%s4] sm:$0x1]
        %v348 = vperm.slane %v346, 0
        %s350 = scalar_lea.vmem [#allocation3], 2
        %v351 = vld [vmem:[%s350] sm:$0x3]
        %v352 = vld [vmem:[#allocation5] sm:$0x3]
        %s353 = scalar_lea.vmem [#allocation5], 2
        %v354 = vld [vmem:[%s353] sm:$0x3]
        %v355 = vld [vmem:[#allocation2] sm:$0x3]
        %v356 = vadd.f32 %v328, %v355
        %v357 = vmul.f32 %v356, 0.5
        %v358 = vtanh.pop %v357
        %v359 = vadd.f32 %v358, 1.0
        %v360 = vmul.f32 %v359, 0.5
        %v361 = vtanh.pop %v356
        %363 = vrot.lane.b32.xlu0 %v352, 32
        %v364 = vpop.permute.xlu0 %363
        %v366 = vmul.f32 %v360, %v364
        %368 = vrot.lane.b32.xlu0 %v361, 32
        %v369 = vpop.permute.xlu0 %368
        %v371 = vmul.f32 %v360, %v369
        %373 = vrot.lane.b32.xlu0 %v371, 32
        %v374 = vpop.permute.xlu0 %373
        %v376 = vadd.f32 %v366, %v374
        %v377 = vtanh.pop %v376
        %379 = vrot.lane.b32.xlu0 %v377, 32
        %v380 = vpop.permute.xlu0 %379
        %v382 = vmul.f32 %v360, %v380
        %384 = vst [vmem:[#allocation1] ss:$4 sm:$0xff] %v382
        %v385 = vld.sshfl [vmem:[#allocation1] sm:$0xff pattern:$0x73625140]
        %386 = vrot.lane.b32.xlu0 %v385, 64
        %v387 = vpop.permute.xlu0 %386
        %390 = vrot.lane.b32.xlu0 %v351, 32
        %v391 = vpop.permute.xlu0 %390
        %vm393 = vcmask 261120
        %v394 = vsel %vm393, %v387, %v391
        %v395 = vpack.c.bf16 %v394, %v394
        %v404 = vunpack.c.l.b16 %v338
        %v405 = vunpack.c.h.b16 %v338
        %v406 = vunpack.c.l.b16 %v339
        %v407 = vunpack.c.h.b16 %v339
        %v408 = vunpack.c.l.b16 %v340
        %v409 = vunpack.c.h.b16 %v340
        %v410 = vunpack.c.l.b16 %v341
        %v411 = vunpack.c.h.b16 %v341
        %v412 = vunpack.c.l.b16 %v342
        %v413 = vunpack.c.h.b16 %v342
        %v414 = vunpack.c.l.b16 %v343
        %v415 = vunpack.c.h.b16 %v343
        %v416 = vunpack.c.l.b16 %v344
        %v417 = vunpack.c.h.b16 %v344
        %v418 = vunpack.c.l.b16 %v345
        %v419 = vunpack.c.h.b16 %v345
        %v420 = vpack.c.b16 %v406, %v404
        %v421 = vpack.c.b16 %v407, %v405
        %v422 = vpack.c.b16 %v410, %v408
        %v423 = vpack.c.b16 %v411, %v409
        %v424 = vpack.c.b16 %v414, %v412
        %v425 = vpack.c.b16 %v415, %v413
        %v426 = vpack.c.b16 %v418, %v416
        %v427 = vpack.c.b16 %v419, %v417
        %vm436 = vcmask 523264
        %v438 = vsel %vm436, %v395, 0
        %440 = vmatpush.bf16.msra.mxu0 0
        %441 = vmatpush.bf16.msra.mxu0 0
        %442 = vmatpush.bf16.msra.mxu0 0
        %443 = vmatpush.bf16.msra.mxu0 0
        %444 = vmatpush.bf16.msra.mxu0 %v426
        %445 = vmatpush.bf16.msra.mxu0 %v424
        %446 = vmatpush.bf16.msra.mxu0 %v422
        %447 = vmatpush.bf16.msra.mxu0 %v420
        %448 = vmatmul.bf16.gmra.mxu0 %v438
        %v449 = vpop.f32.mrf.mxu0
        %v450 = vadd.f32 0.0, %v449
        %v451 = vpop.f32.mrf.mxu0
        %452 = vdwg.mxu0
        %453 = vmatpush.bf16.msra.mxu0 0
        %454 = vmatpush.bf16.msra.mxu0 0
        %455 = vmatpush.bf16.msra.mxu0 0
        %456 = vmatpush.bf16.msra.mxu0 0
        %457 = vmatpush.bf16.msra.mxu0 %v427
        %458 = vmatpush.bf16.msra.mxu0 %v425
        %459 = vmatpush.bf16.msra.mxu0 %v423
        %460 = vmatpush.bf16.msra.mxu0 %v421
        %461 = vmatmul.bf16.gmra.mxu0 %v438
        %v462 = vpop.f32.mrf.mxu0
        %v463 = vadd.f32 0.0, %v462
        %v464 = vpop.f32.mrf.mxu0
        %465 = vdwg.mxu0
        %v466 = vadd.f32 %v463, %v348
        %v467 = vmul.f32 %v466, 0.5
        %v468 = vtanh.pop %v467
        %v469 = vadd.f32 %v468, 1.0
        %v470 = vmul.f32 %v469, 0.5
        %v471 = vtanh.pop %v466
        %473 = vrot.lane.b32.xlu0 %v354, 32
        %v474 = vpop.permute.xlu0 %473
        %v476 = vmul.f32 %v470, %v474
        %478 = vrot.lane.b32.xlu0 %v471, 32
        %v479 = vpop.permute.xlu0 %478
        %v481 = vmul.f32 %v470, %v479
        %483 = vrot.lane.b32.xlu0 %v481, 32
        %v484 = vpop.permute.xlu0 %483
        %v486 = vadd.f32 %v476, %v484
        %v487 = vtanh.pop %v486
        %489 = vrot.lane.b32.xlu0 %v487, 32
        %v490 = vpop.permute.xlu0 %489
        %v492 = vmul.f32 %v470, %v490
        %494 = vrot.lane.b32.xlu0 %v492, 64
        %v495 = vpop.permute.xlu0 %494
        %vm497 = vcmask 254976
        %498 = vst.msk [vmem:[%s274] sm:$0x3] %vm497, %v495
        %v499 = vadd.f32 %v332, %v450
        %v500 = vmul.f32 %v499, 0.5
        %v501 = vtanh.pop %v500
        %v502 = vadd.f32 %v501, 1.0
        %v503 = vmul.f32 %v502, 0.5
        %v504 = vtanh.pop %v499
        %v505 = vmul.f32 %v503, %v376
        %507 = vrot.lane.b32.xlu0 %v504, 32
        %v508 = vpop.permute.xlu0 %507
        %v510 = vmul.f32 %v503, %v508
        %512 = vrot.lane.b32.xlu0 %v510, 32
        %v513 = vpop.permute.xlu0 %512
        %v515 = vadd.f32 %v505, %v513
        %v516 = vtanh.pop %v515
        %518 = vrot.lane.b32.xlu0 %v516, 32
        %v519 = vpop.permute.xlu0 %518
        %v521 = vmul.f32 %v503, %v519
        %523 = vst [vmem:[#allocation1] ss:$4 sm:$0xff] %v521
        %v524 = vld.sshfl [vmem:[#allocation1] sm:$0xff pattern:$0x73625140]
        %525 = vrot.lane.b32.xlu0 %v524, 64
        %v526 = vpop.permute.xlu0 %525
        %528 = vrot.lane.b32.xlu0 %v492, 96
        %v529 = vpop.permute.xlu0 %528
        %v531 = vsel %vm393, %v526, %v529
        %v532 = vpack.c.bf16 %v531, %v531
        %v534 = vsel %vm436, %v532, 0
        %536 = vmatpush.bf16.msra.mxu0 0
        %537 = vmatpush.bf16.msra.mxu0 0
        %538 = vmatpush.bf16.msra.mxu0 0
        %539 = vmatpush.bf16.msra.mxu0 0
        %540 = vmatpush.bf16.msra.mxu0 %v426
        %541 = vmatpush.bf16.msra.mxu0 %v424
        %542 = vmatpush.bf16.msra.mxu0 %v422
        %543 = vmatpush.bf16.msra.mxu0 %v420
        %544 = vmatmul.bf16.gmra.mxu0 %v534
        %v545 = vpop.f32.mrf.mxu0
        %v546 = vadd.f32 0.0, %v545
        %v547 = vpop.f32.mrf.mxu0
        %548 = vdwg.mxu0
        %549 = vmatpush.bf16.msra.mxu0 0
        %550 = vmatpush.bf16.msra.mxu0 0
        %551 = vmatpush.bf16.msra.mxu0 0
        %552 = vmatpush.bf16.msra.mxu0 0
        %553 = vmatpush.bf16.msra.mxu0 %v427
        %554 = vmatpush.bf16.msra.mxu0 %v425
        %555 = vmatpush.bf16.msra.mxu0 %v423
        %556 = vmatpush.bf16.msra.mxu0 %v421
        %557 = vmatmul.bf16.gmra.mxu0 %v534
        %v558 = vpop.f32.mrf.mxu0
        %v559 = vadd.f32 0.0, %v558
        %v560 = vpop.f32.mrf.mxu0
        %561 = vdwg.mxu0
        %v562 = vadd.f32 %v559, %v348
        %v563 = vmul.f32 %v562, 0.5
        %v564 = vtanh.pop %v563
        %v565 = vadd.f32 %v564, 1.0
        %v566 = vmul.f32 %v565, 0.5
        %v567 = vtanh.pop %v562
        %v568 = vmul.f32 %v566, %v486
        %570 = vrot.lane.b32.xlu0 %v567, 32
        %v571 = vpop.permute.xlu0 %570
        %v573 = vmul.f32 %v566, %v571
        %575 = vrot.lane.b32.xlu0 %v573, 32
        %v576 = vpop.permute.xlu0 %575
        %v578 = vadd.f32 %v568, %v576
        %v579 = vtanh.pop %v578
        %581 = vrot.lane.b32.xlu0 %v579, 32
        %v582 = vpop.permute.xlu0 %581
        %v584 = vmul.f32 %v566, %v582
        %586 = vrot.lane.b32.xlu0 %v584, 64
        %v587 = vpop.permute.xlu0 %586
        %s589 = scalar_lea.vmem %s274, 2
        %590 = vst.msk [vmem:[%s589] sm:$0x3] %vm497, %v587
        %v591 = vadd.f32 %v333, %v546
        %v592 = vmul.f32 %v591, 0.5
        %v593 = vtanh.pop %v592
        %v594 = vadd.f32 %v593, 1.0
        %v595 = vmul.f32 %v594, 0.5
        %v596 = vtanh.pop %v591
        %v597 = vmul.f32 %v595, %v515
        %599 = vrot.lane.b32.xlu0 %v596, 32
        %v600 = vpop.permute.xlu0 %599
        %v602 = vmul.f32 %v595, %v600
        %604 = vrot.lane.b32.xlu0 %v602, 32
        %v605 = vpop.permute.xlu0 %604
        %v607 = vadd.f32 %v597, %v605
        %v608 = vtanh.pop %v607
        %610 = vrot.lane.b32.xlu0 %v608, 32
        %v611 = vpop.permute.xlu0 %610
        %v613 = vmul.f32 %v595, %v611
        %615 = vst [vmem:[#allocation1] ss:$4 sm:$0xff] %v613
        %v616 = vld.sshfl [vmem:[#allocation1] sm:$0xff pattern:$0x73625140]
        %617 = vrot.lane.b32.xlu0 %v616, 64
        %v618 = vpop.permute.xlu0 %617
        %620 = vrot.lane.b32.xlu0 %v584, 96
        %v621 = vpop.permute.xlu0 %620
        %v623 = vsel %vm393, %v618, %v621
        %v624 = vpack.c.bf16 %v623, %v623
        %v626 = vsel %vm436, %v624, 0
        %628 = vmatpush.bf16.msra.mxu0 0
        %629 = vmatpush.bf16.msra.mxu0 0
        %630 = vmatpush.bf16.msra.mxu0 0
        %631 = vmatpush.bf16.msra.mxu0 0
        %632 = vmatpush.bf16.msra.mxu0 %v426
        %633 = vmatpush.bf16.msra.mxu0 %v424
        %634 = vmatpush.bf16.msra.mxu0 %v422
        %635 = vmatpush.bf16.msra.mxu0 %v420
        %636 = vmatmul.bf16.gmra.mxu0 %v626
        %v637 = vpop.f32.mrf.mxu0
        %v638 = vadd.f32 0.0, %v637
        %v639 = vpop.f32.mrf.mxu0
        %640 = vdwg.mxu0
        %641 = vmatpush.bf16.msra.mxu0 0
        %642 = vmatpush.bf16.msra.mxu0 0
        %643 = vmatpush.bf16.msra.mxu0 0
        %644 = vmatpush.bf16.msra.mxu0 0
        %645 = vmatpush.bf16.msra.mxu0 %v427
        %646 = vmatpush.bf16.msra.mxu0 %v425
        %647 = vmatpush.bf16.msra.mxu0 %v423
        %648 = vmatpush.bf16.msra.mxu0 %v421
        %649 = vmatmul.bf16.gmra.mxu0 %v626
        %v650 = vpop.f32.mrf.mxu0
        %v651 = vadd.f32 0.0, %v650
        %v652 = vpop.f32.mrf.mxu0
        %653 = vdwg.mxu0
        %v654 = vadd.f32 %v651, %v348
        %v655 = vmul.f32 %v654, 0.5
        %v656 = vtanh.pop %v655
        %v657 = vadd.f32 %v656, 1.0
        %v658 = vmul.f32 %v657, 0.5
        %v659 = vtanh.pop %v654
        %v660 = vmul.f32 %v658, %v578
        %662 = vrot.lane.b32.xlu0 %v659, 32
        %v663 = vpop.permute.xlu0 %662
        %v665 = vmul.f32 %v658, %v663
        %667 = vrot.lane.b32.xlu0 %v665, 32
        %v668 = vpop.permute.xlu0 %667
        %v670 = vadd.f32 %v660, %v668
        %v671 = vtanh.pop %v670
        %673 = vrot.lane.b32.xlu0 %v671, 32
        %v674 = vpop.permute.xlu0 %673
        %v676 = vmul.f32 %v658, %v674
        %678 = vrot.lane.b32.xlu0 %v676, 64
        %v679 = vpop.permute.xlu0 %678
        %s681 = scalar_lea.vmem %s274, 4
        %682 = vst.msk [vmem:[%s681] sm:$0x3] %vm497, %v679
        %v683 = vadd.f32 %v334, %v638
        %v684 = vmul.f32 %v683, 0.5
        %v685 = vtanh.pop %v684
        %v686 = vadd.f32 %v685, 1.0
        %v687 = vmul.f32 %v686, 0.5
        %v688 = vtanh.pop %v683
        %v689 = vmul.f32 %v687, %v607
        %691 = vrot.lane.b32.xlu0 %v688, 32
        %v692 = vpop.permute.xlu0 %691
        %v694 = vmul.f32 %v687, %v692
        %696 = vrot.lane.b32.xlu0 %v694, 32
        %v697 = vpop.permute.xlu0 %696
        %v699 = vadd.f32 %v689, %v697
        %v700 = vtanh.pop %v699
        %702 = vrot.lane.b32.xlu0 %v700, 32
        %v703 = vpop.permute.xlu0 %702
        %v705 = vmul.f32 %v687, %v703
        %707 = vst [vmem:[#allocation1] ss:$4 sm:$0xff] %v705
        %v708 = vld.sshfl [vmem:[#allocation1] sm:$0xff pattern:$0x73625140]
        %709 = vrot.lane.b32.xlu0 %v708, 64
        %v710 = vpop.permute.xlu0 %709
        %712 = vrot.lane.b32.xlu0 %v676, 96
        %v713 = vpop.permute.xlu0 %712
        %v715 = vsel %vm393, %v710, %v713
        %v716 = vpack.c.bf16 %v715, %v715
        %v718 = vsel %vm436, %v716, 0
        %720 = vmatpush.bf16.msra.mxu0 0
        %721 = vmatpush.bf16.msra.mxu0 0
        %722 = vmatpush.bf16.msra.mxu0 0
        %723 = vmatpush.bf16.msra.mxu0 0
        %724 = vmatpush.bf16.msra.mxu0 %v426
        %725 = vmatpush.bf16.msra.mxu0 %v424
        %726 = vmatpush.bf16.msra.mxu0 %v422
        %727 = vmatpush.bf16.msra.mxu0 %v420
        %728 = vmatmul.bf16.gmra.mxu0 %v718
        %v729 = vpop.f32.mrf.mxu0
        %v730 = vadd.f32 0.0, %v729
        %v731 = vpop.f32.mrf.mxu0
        %732 = vdwg.mxu0
        %733 = vmatpush.bf16.msra.mxu0 0
        %734 = vmatpush.bf16.msra.mxu0 0
        %735 = vmatpush.bf16.msra.mxu0 0
        %736 = vmatpush.bf16.msra.mxu0 0
        %737 = vmatpush.bf16.msra.mxu0 %v427
        %738 = vmatpush.bf16.msra.mxu0 %v425
        %739 = vmatpush.bf16.msra.mxu0 %v423
        %740 = vmatpush.bf16.msra.mxu0 %v421
        %741 = vmatmul.bf16.gmra.mxu0 %v718
        %v742 = vpop.f32.mrf.mxu0
        %v743 = vadd.f32 0.0, %v742
        %v744 = vpop.f32.mrf.mxu0
        %745 = vdwg.mxu0
        %v746 = vadd.f32 %v743, %v348
        %v747 = vmul.f32 %v746, 0.5
        %v748 = vtanh.pop %v747
        %v749 = vadd.f32 %v748, 1.0
        %v750 = vmul.f32 %v749, 0.5
        %v751 = vtanh.pop %v746
        %v752 = vmul.f32 %v750, %v670
        %754 = vrot.lane.b32.xlu0 %v751, 32
        %v755 = vpop.permute.xlu0 %754
        %v757 = vmul.f32 %v750, %v755
        %759 = vrot.lane.b32.xlu0 %v757, 32
        %v760 = vpop.permute.xlu0 %759
        %v762 = vadd.f32 %v752, %v760
        %v763 = vtanh.pop %v762
        %765 = vrot.lane.b32.xlu0 %v763, 32
        %v766 = vpop.permute.xlu0 %765
        %v768 = vmul.f32 %v750, %v766
        %770 = vrot.lane.b32.xlu0 %v768, 64
        %v771 = vpop.permute.xlu0 %770
        %s773 = scalar_lea.vmem %s274, 6
        %774 = vst.msk [vmem:[%s773] sm:$0x3] %vm497, %v771
        %775 = vst [vmem:[#allocation1] ss:$4 sm:$0xff] %v705
        %v776 = vld.sshfl [vmem:[#allocation1] sm:$0xff pattern:$0x73625140]
        %777 = vrot.lane.b32.xlu0 %v776, 64
        %v778 = vpop.permute.xlu0 %777
        %780 = vst.msk [vmem:[#allocation3] sm:$0x3] %vm497, %v778
        %781 = vst.msk [vmem:[%s350] sm:$0x3] %vm497, %v771
        %783 = vst [vmem:[#allocation1] ss:$4 sm:$0xff] %v699
        %v784 = vld.sshfl [vmem:[#allocation1] sm:$0xff pattern:$0x73625140]
        %785 = vrot.lane.b32.xlu0 %v784, 96
        %v786 = vpop.permute.xlu0 %785
        %788 = vst.msk [vmem:[#allocation5] sm:$0x3] %vm497, %v786
        %790 = vrot.lane.b32.xlu0 %v762, 96
        %v791 = vpop.permute.xlu0 %790
        %793 = vst.msk [vmem:[%s353] sm:$0x3] %vm497, %v791
        %794 = vst [vmem:[#allocation2] sm:$0x3] %v730
        %s795 = smul.u32 4, %s21
        %p796 = scmp.lt.s32.totalorder %s795, 7
        %s797 = scalar_select %p796, %s795, 7
        %s798 = smul.addr %s797, 2
        %s799 = scalar_lea.vmem %s5, %s798
        // Predicated region
        $region45: #{encoder_forward.1} parent=39 // pred_check
          %p800 = pneg %p149
        $region46: #{encoder_forward.1} parent=39 // pred_check_branch
          %802 = sbr.rel (%p800) target = $region48
        $region47: #{encoder_forward.1} parent=39 // pred_region
          %s803 = smul.u32 4, %s21
        $region48: #{encoder_forward.1} parent=39 // pred_fallthru
          _
        // Predicated region
        $region49: #{encoder_forward.1} parent=39 // pred_check
          %p804 = pneg %p170
        $region50: #{encoder_forward.1} parent=39 // pred_check_branch
          %806 = sbr.rel (%p804) target = $region52
        $region51: #{encoder_forward.1} parent=39 // pred_region
          %808 = vsyncadd [#allocation4], 0
          %s809 = sshll.u32 [#allocation3], 4
          %s810 = int_to_ptr.vmem [resolvable:$true] %s809
          %s811 = sshll.u32 %s6, 4
          %s812 = int_to_ptr.hbm [resolvable:$true] %s811
          %817 = dma.vmem_to_hbm [thread:$0]  %s810, 64, %s812, [#allocation4], 32, 32, 2
        $region52: #{encoder_forward.1} parent=39 // pred_fallthru
          _
        // Predicated region
        $region53: #{encoder_forward.1} parent=39 // pred_check
          %p818 = pneg %p191
        $region54: #{encoder_forward.1} parent=39 // pred_check_branch
          %820 = sbr.rel (%p818) target = $region56
        $region55: #{encoder_forward.1} parent=39 // pred_region
          %822 = vsyncadd [#allocation6], 0
          %s823 = sshll.u32 [#allocation5], 4
          %s824 = int_to_ptr.vmem [resolvable:$true] %s823
          %s825 = sshll.u32 %s7, 4
          %s826 = int_to_ptr.hbm [resolvable:$true] %s825
          %831 = dma.vmem_to_hbm [thread:$0]  %s824, 64, %s826, [#allocation6], 32, 32, 2
        $region56: #{encoder_forward.1} parent=39 // pred_fallthru
          _
        // Predicated region
        $region57: #{encoder_forward.1} parent=39 // pred_check
          %p832 = pneg %p170
        $region58: #{encoder_forward.1} parent=39 // pred_check_branch
          %834 = sbr.rel (%p832) target = $region60
        $region59: #{encoder_forward.1} parent=39 // pred_region
          %836 = dma.done [#allocation4], 64
        $region60: #{encoder_forward.1} parent=39 // pred_fallthru
          _
        // Predicated region
        $region61: #{encoder_forward.1} parent=39 // pred_check
          %p837 = pneg %p191
        $region62: #{encoder_forward.1} parent=39 // pred_check_branch
          %839 = sbr.rel (%p837) target = $region64
        $region63: #{encoder_forward.1} parent=39 // pred_region
          %841 = dma.done [#allocation6], 64
        $region64: #{encoder_forward.1} parent=39 // pred_fallthru
          _
      $region40: #{encoder_forward.1} parent=5 // pred_fallthru
        _
      %p842 = scmp.le.s32.totalorder 2, %s16
      // Predicated region
      $region65: #{encoder_forward.1} parent=5 // pred_check
        %p843 = pneg %p842
      $region66: #{encoder_forward.1} parent=5 // pred_check_branch
        %845 = sbr.rel (%p843) target = $region68
      $region67: #{encoder_forward.1} parent=5 // pred_region
        %s846 = ssub.s32 %s16, 2
        // Predicated region
        $region69: #{encoder_forward.1} parent=67 // pred_check
          %p847 = pneg %p155
        $region70: #{encoder_forward.1} parent=67 // pred_check_branch
          %849 = sbr.rel (%p847) target = $region72
        $region71: #{encoder_forward.1} parent=67 // pred_region
          %s850 = smul.u32 4, %s22
          %p851 = scmp.lt.s32.totalorder %s850, 7
          %s852 = scalar_select %p851, %s850, 7
          %s853 = smul.addr %s852, 2
          %s854 = scalar_lea.vmem %s5, %s853
        $region72: #{encoder_forward.1} parent=67 // pred_fallthru
          _
      $region68: #{encoder_forward.1} parent=5 // pred_fallthru
        _
    $region6: #{encoder_forward.1} parent=1 // loop_footer
      %s20 = sadd.s32 1, %s16
    $region7: #{encoder_forward.1} parent=1 // loop_footer_branch
      %15 = sbr.rel target = $region3
    $region8: #{encoder_forward.1} parent=1 // loop_exit
      _
    %855 = vsyncpa [#allocation4], 1
    %s856 = scalar_lea.sflag [#allocation4], 1
    %857 = vsyncpa %s856, 1
    %858 = vsyncpa [#allocation6], 1

</llo_original>
